<compile_context>
chip_gen: v5e
topology: v5e:2x2
jax: 0.10.0
libtpu: 0.0.40
codegen_flags: <defaults>
</compile_context>

<pallas_src>
import functools
import math

import jax
import jax.numpy as jnp
from jax import lax
from jax.experimental import pallas as pl
from jax.experimental.pallas import tpu as pltpu

_LANES = 128
_SUBLANES = 8
_VMEM_LIMIT = 48 * 1024 * 1024  # fits v5e/v6e (128 MiB) and v7x (64 MiB/TC)


def _round_up(x, m):
    return (x + m - 1) // m * m


def _focal_elementwise(p, t, *, alpha, gamma):
    """Per-element focal loss in f32. alpha/gamma are static Python floats."""
    p = p.astype(jnp.float32)
    t = t.astype(jnp.float32)
    # F.binary_cross_entropy: -(t*log(p) + (1-t)*log(1-p)), log clamped at -100.
    # Clamp BEFORE the multiply so t=0 (or padded p=1) gives 0*(-100)=0, not NaN.
    log_p = jnp.maximum(jnp.log(p), -100.0)
    log_1mp = jnp.maximum(jnp.log1p(-p), -100.0)
    one_m_t = 1.0 - t
    ce = -(t * log_p + one_m_t * log_1mp)
    p_t = p * t + (1.0 - p) * one_m_t
    one_m_pt = 1.0 - p_t
    g = float(gamma)
    if g == 0.0:
        mod = None
    elif g.is_integer() and 1.0 <= g <= 4.0:
        # Small integer exponent -> plain VPU multiplies, no EUP pow.
        mod = one_m_pt
        for _ in range(int(g) - 1):
            mod = mod * one_m_pt
    else:
        mod = jnp.power(one_m_pt, g)
    loss = ce if mod is None else ce * mod
    if alpha >= 0.0:
        alpha_t = alpha * t + (1.0 - alpha) * one_m_t
        loss = alpha_t * loss
    return loss


def _focal_none_kernel(p_ref, t_ref, o_ref, *, alpha, gamma):
    loss = _focal_elementwise(p_ref[...], t_ref[...], alpha=alpha, gamma=gamma)
    o_ref[...] = loss.astype(o_ref.dtype)


def _focal_partial_sum_kernel(p_ref, t_ref, o_ref, *, alpha, gamma, n_rows,
                              rows_per_tile):
    """Writes one independent (8,128) lane-wise partial sum per grid step."""
    k = pl.program_id(0)
    loss = _focal_elementwise(p_ref[...], t_ref[...], alpha=alpha, gamma=gamma)

    def lane_partial(x):
        # VPU-only adds across sublane-groups; cross-lane reduce deferred to JAX.
        return jnp.sum(
            x.reshape(rows_per_tile // _SUBLANES, _SUBLANES, _LANES), axis=0)

    if n_rows % rows_per_tile != 0:
        last = pl.num_programs(0) - 1

        # Only the last block reads out-of-bounds (garbage) rows; the mask
        # (iota + cmp + select) is gated here instead of running every step.
        @pl.when(k == last)
        def _():
            row = k * rows_per_tile + lax.broadcasted_iota(
                jnp.int32, loss.shape, 0)
            o_ref[0] = lane_partial(jnp.where(row < n_rows, loss, 0.0))

        @pl.when(k != last)
        def _():
            o_ref[0] = lane_partial(loss)
    else:
        o_ref[0] = lane_partial(loss)


def focal_loss(inputs, targets, alpha=-1.0, gamma=2.0, reduction="none",
               rows_per_tile=8192):
    """Pallas TPU implementation of FocalLoss.forward."""
    assert inputs.shape == targets.shape
    orig_shape = inputs.shape
    out_dtype = inputs.dtype
    n = math.prod(orig_shape)

    p = inputs.reshape(-1)   # free row-major reshape (bitcast)
    t = targets.reshape(-1)

    # Zero-copy fast path when numel is a multiple of 128 lanes and at least
    # one (8,128) tile.  Otherwise pad the tiny tail with (p=1, t=1), which
    # contributes exactly zero focal loss.
    padded_n = max(_round_up(n, _LANES), _SUBLANES * _LANES)
    pad = padded_n - n
    if pad:
        # TODO(synk): sizes not a multiple of 128 still cost one extra HBM pass
        # (concatenate + output slice); a fully copy-free path needs 1-D blocks.
        p = jnp.concatenate([p, jnp.ones((pad,), p.dtype)])
        t = jnp.concatenate([t, jnp.ones((pad,), t.dtype)])
    rows = padded_n // _LANES
    p2 = p.reshape(rows, _LANES)
    t2 = t.reshape(rows, _LANES)

    # Tile the rows axis; cap the tile so the grid keeps >= ~4 steps
    # (pipeline overlap + megacore sharding on v7x even for small inputs).
    tr = _round_up(int(rows_per_tile), _SUBLANES)
    tr_cap = max(_SUBLANES, _round_up(pl.cdiv(rows, 4), _SUBLANES))
    tr = min(tr, tr_cap)
    grid = (pl.cdiv(rows, tr),)

    in_specs = [
        pl.BlockSpec((tr, _LANES), lambda k: (k, 0)),
        pl.BlockSpec((tr, _LANES), lambda k: (k, 0)),
    ]
    in_bytes = n * (p2.dtype.itemsize + t2.dtype.itemsize)
    transcendentals = 2 * n  # log + log1p per element (EUP)

    if reduction == "none":
        out2 = pl.pallas_call(
            functools.partial(_focal_none_kernel,
                              alpha=float(alpha), gamma=float(gamma)),
            out_shape=jax.ShapeDtypeStruct((rows, _LANES), out_dtype),
            grid_spec=pltpu.PrefetchScalarGridSpec(
                num_scalar_prefetch=0,
                grid=grid,
                in_specs=in_specs,
                out_specs=pl.BlockSpec((tr, _LANES), lambda k: (k, 0)),
            ),
            compiler_params=pltpu.CompilerParams(
                dimension_semantics=("parallel",),
                vmem_limit_bytes=_VMEM_LIMIT),
            cost_estimate=pl.CostEstimate(
                flops=13 * n,
                transcendentals=transcendentals,
                bytes_accessed=in_bytes + n * jnp.dtype(out_dtype).itemsize),
        )(p2, t2)
        flat = out2.reshape(-1)
        if pad:
            flat = flat[:n]
        return flat.reshape(orig_shape)

    if reduction not in ("mean", "sum"):
        raise ValueError(f"unsupported reduction: {reduction!r}")

    partials = pl.pallas_call(
        functools.partial(_focal_partial_sum_kernel,
                          alpha=float(alpha), gamma=float(gamma),
                          n_rows=rows, rows_per_tile=tr),
        out_shape=jax.ShapeDtypeStruct((grid[0], _SUBLANES, _LANES),
                                       jnp.float32),
        grid_spec=pltpu.PrefetchScalarGridSpec(
            num_scalar_prefetch=0,
            grid=grid,
            in_specs=in_specs,
            out_specs=pl.BlockSpec((1, _SUBLANES, _LANES),
                                   lambda k: (k, 0, 0)),
        ),
        compiler_params=pltpu.CompilerParams(
            dimension_semantics=("parallel",),
            vmem_limit_bytes=_VMEM_LIMIT),
        cost_estimate=pl.CostEstimate(
            flops=14 * n,
            transcendentals=transcendentals,
            bytes_accessed=in_bytes + grid[0] * _SUBLANES * _LANES * 4),
    )(p2, t2)

    total = jnp.sum(partials, dtype=jnp.float32)
    if reduction == "mean":
        total = total / n
    return total.astype(out_dtype)


def _focal_loss_ref(inputs, targets, alpha=-1.0, gamma=2.0, reduction="none"):
    """Pure-JAX mirror of the PyTorch FocalLoss.forward."""
    p = inputs.astype(jnp.float32)
    t = targets.astype(jnp.float32)
    log_p = jnp.maximum(jnp.log(p), -100.0)
    log_1mp = jnp.maximum(jnp.log1p(-p), -100.0)
    ce = -(t * log_p + (1.0 - t) * log_1mp)
    p_t = p * t + (1.0 - p) * (1.0 - t)
    loss = ce * (1.0 - p_t) ** gamma
    if alpha >= 0:
        alpha_t = alpha * t + (1.0 - alpha) * (1.0 - t)
        loss = alpha_t * loss
    if reduction == "mean":
        return jnp.mean(loss)
    if reduction == "sum":
        return jnp.sum(loss)
    return loss


if __name__ == "__main__":
    key = jax.random.PRNGKey(0)
    k1, k2, k3, k4, k5, k6 = jax.random.split(key, 6)

    B, C, H, W = 2, 4, 16, 16
    inputs = jax.nn.sigmoid(jax.random.normal(k1, (B, C, H, W), jnp.float32))
    targets = (jax.random.uniform(k2, (B, C, H, W)) > 0.5).astype(jnp.float32)

    # Default config: alpha=-1, gamma=2, reduction='none' (elementwise output).
    out = jax.block_until_ready(focal_loss(inputs, targets))
    ref = jax.block_until_ready(_focal_loss_ref(inputs, targets))
    assert out.shape == ref.shape
    assert jnp.allclose(out, ref, atol=1e-5, rtol=1e-5)

    # Alpha weighting + mean reduction path.
    out_m = jax.block_until_ready(
        focal_loss(inputs, targets, alpha=0.25, gamma=2.0, reduction="mean"))
    ref_m = jax.block_until_ready(
        _focal_loss_ref(inputs, targets, alpha=0.25, gamma=2.0, reduction="mean"))
    assert jnp.allclose(out_m, ref_m, atol=1e-5, rtol=1e-5)

    # Sum reduction path.
    out_s = jax.block_until_ready(
        focal_loss(inputs, targets, alpha=0.5, gamma=2.0, reduction="sum"))
    ref_s = jax.block_until_ready(
        _focal_loss_ref(inputs, targets, alpha=0.5, gamma=2.0, reduction="sum"))
    assert jnp.allclose(out_s, ref_s, atol=1e-4, rtol=1e-5)

    # Element count not a multiple of 128 (exercises the tiny zero-loss pad
    # fallback + output slicing).
    inputs2 = jax.nn.sigmoid(jax.random.normal(k3, (2, 3, 10, 10), jnp.float32))
    targets2 = (jax.random.uniform(k4, (2, 3, 10, 10)) > 0.5).astype(jnp.float32)
    out2 = jax.block_until_ready(focal_loss(inputs2, targets2))
    ref2 = jax.block_until_ready(_focal_loss_ref(inputs2, targets2))
    assert jnp.allclose(out2, ref2, atol=1e-5, rtol=1e-5)
    out2_m = jax.block_until_ready(
        focal_loss(inputs2, targets2, alpha=0.25, reduction="mean"))
    ref2_m = jax.block_until_ready(
        _focal_loss_ref(inputs2, targets2, alpha=0.25, reduction="mean"))
    assert jnp.allclose(out2_m, ref2_m, atol=1e-5, rtol=1e-5)

    # Multiple of 128 but ragged row count vs the tile (zero-copy path,
    # multi-step grid, boundary block + gated mask in the reduce kernel).
    inputs3 = jax.nn.sigmoid(jax.random.normal(k5, (3, 9, 16, 16), jnp.float32))
    targets3 = (jax.random.uniform(k6, (3, 9, 16, 16)) > 0.5).astype(jnp.float32)
    out3 = jax.block_until_ready(focal_loss(inputs3, targets3, alpha=0.25))
    ref3 = jax.block_until_ready(_focal_loss_ref(inputs3, targets3, alpha=0.25))
    assert jnp.allclose(out3, ref3, atol=1e-5, rtol=1e-5)
    out3_s = jax.block_until_ready(
        focal_loss(inputs3, targets3, alpha=0.25, reduction="sum"))
    ref3_s = jax.block_until_ready(
        _focal_loss_ref(inputs3, targets3, alpha=0.25, reduction="sum"))
    assert jnp.allclose(out3_s, ref3_s, atol=1e-4, rtol=1e-5)

    print("KERNEL_OK")
</pallas_src>

<mosaic_0001>
module attributes {stable_mosaic.version = 11 : i64} {
  func.func @_focal_none_kernel(%arg0: i32, %arg1: memref<8x128xf32, #tpu.memory_space<vmem>>, %arg2: memref<8x128xf32, #tpu.memory_space<vmem>>, %arg3: memref<8x128xf32, #tpu.memory_space<vmem>>) attributes {dimension_semantics = [#tpu.dimension_semantics<parallel>], iteration_bounds = array<i64: 2>, scalar_prefetch = 0 : i64, scratch_operands = 0 : i64, tpu.core_type = #tpu.core_type<tc>, window_params = [{transform_indices = @transform_0, window_bounds = array<i64: 8, 128>}, {transform_indices = @transform_1, window_bounds = array<i64: 8, 128>}, {transform_indices = @transform_2, window_bounds = array<i64: 8, 128>}]} {
    %c0 = arith.constant 0 : index
    %c0_0 = arith.constant 0 : index
    %0 = vector.load %arg1[%c0, %c0_0] : memref<8x128xf32, #tpu.memory_space<vmem>>, vector<8x128xf32>
    %c0_1 = arith.constant 0 : index
    %c0_2 = arith.constant 0 : index
    %1 = vector.load %arg2[%c0_1, %c0_2] : memref<8x128xf32, #tpu.memory_space<vmem>>, vector<8x128xf32>
    %2 = math.log %0 : vector<8x128xf32>
    %cst = arith.constant -1.000000e+02 : f32
    %3 = vector.broadcast %cst : f32 to vector<8x128xf32>
    %4 = arith.maximumf %2, %3 : vector<8x128xf32>
    %cst_3 = arith.constant 0.000000e+00 : f32
    %5 = vector.broadcast %cst_3 : f32 to vector<8x128xf32>
    %6 = arith.subf %5, %0 : vector<8x128xf32>
    %7 = math.log1p %6 : vector<8x128xf32>
    %cst_4 = arith.constant -1.000000e+02 : f32
    %8 = vector.broadcast %cst_4 : f32 to vector<8x128xf32>
    %9 = arith.maximumf %7, %8 : vector<8x128xf32>
    %cst_5 = arith.constant 1.000000e+00 : f32
    %10 = vector.broadcast %cst_5 : f32 to vector<8x128xf32>
    %11 = arith.subf %10, %1 : vector<8x128xf32>
    %12 = arith.mulf %1, %4 : vector<8x128xf32>
    %13 = arith.mulf %11, %9 : vector<8x128xf32>
    %14 = arith.addf %12, %13 : vector<8x128xf32>
    %cst_6 = arith.constant 0.000000e+00 : f32
    %15 = vector.broadcast %cst_6 : f32 to vector<8x128xf32>
    %16 = arith.subf %15, %14 : vector<8x128xf32>
    %17 = arith.mulf %0, %1 : vector<8x128xf32>
    %cst_7 = arith.constant 1.000000e+00 : f32
    %18 = vector.broadcast %cst_7 : f32 to vector<8x128xf32>
    %19 = arith.subf %18, %0 : vector<8x128xf32>
    %20 = arith.mulf %19, %11 : vector<8x128xf32>
    %21 = arith.addf %17, %20 : vector<8x128xf32>
    %cst_8 = arith.constant 1.000000e+00 : f32
    %22 = vector.broadcast %cst_8 : f32 to vector<8x128xf32>
    %23 = arith.subf %22, %21 : vector<8x128xf32>
    %24 = arith.mulf %23, %23 : vector<8x128xf32>
    %25 = arith.mulf %16, %24 : vector<8x128xf32>
    %c0_9 = arith.constant 0 : index
    %c0_10 = arith.constant 0 : index
    %26 = vector.load %arg3[%c0_9, %c0_10] : memref<8x128xf32, #tpu.memory_space<vmem>>, vector<8x128xf32>
    tpu.vector_store %arg3[%c0_9, %c0_10], %25 {strides = array<i32>} : memref<8x128xf32, #tpu.memory_space<vmem>>, vector<8x128xf32>,
    return
  }
  func.func @transform_0(%arg0: i32) -> (i32, i32) {
    %c0_i32 = arith.constant 0 : i32
    %c0_i32_0 = arith.constant 0 : i32
    return %arg0, %c0_i32 : i32, i32
  }
  func.func @transform_1(%arg0: i32) -> (i32, i32) {
    %c0_i32 = arith.constant 0 : i32
    %c0_i32_0 = arith.constant 0 : i32
    return %arg0, %c0_i32 : i32, i32
  }
  func.func @transform_2(%arg0: i32) -> (i32, i32) {
    %c0_i32 = arith.constant 0 : i32
    %c0_i32_0 = arith.constant 0 : i32
    return %arg0, %c0_i32 : i32, i32
  }
}

</mosaic_0001>

<llo_original>
// kernel: tpu_custom_call.1
$region0: #{tpu_custom_call.1}
  #allocation0 [shape = 'u32[]', space=smem, size = 0x4, offset = 0x4, fixed_abs, tag = 'smem constant byte address 0x4 - core index']
  #allocation1 [shape = 'u32[72,128]{1,0:T(1,128)}', space=vmem, size = 0x9000, scoped, tag = 'internal scratch']
  %s0 = inlined_call_operand.hbm [shape: f32[16,128], index: 0, kind: input, shape index: {}]
  %s1 = inlined_call_operand.hbm [shape: f32[16,128], index: 1, kind: input, shape index: {}]
  %s2 = inlined_call_operand.hbm [shape: f32[16,128], index: 2, kind: output, shape index: {}]
  %s3 = sld [smem:[#allocation0]]
  $region49: #{tpu_custom_call.1} parent=0
    _
  %s5 = ssub.s32 1, %s3
  %s6 = scalar_select 0, %s5, %s3
  $region1: #{tpu_custom_call.1} parent=0
    #allocation2 [shape = 'u8[8192]{0}', space=vmem, size = 0x2000, scoped, tag = 'input window, operand 0']
    #allocation3 [shape = 's32[2]{0}', space=sflag, size = 0x8, scoped, tag = 'scoped memory for tpu_custom_call.1']
    #allocation4 [shape = 's32[2]{0}', space=sflag, size = 0x8, scoped, tag = 'scoped memory for tpu_custom_call.1']
    #allocation5 [shape = 'u8[8192]{0}', space=vmem, size = 0x2000, scoped, tag = 'input window, operand 1']
    #allocation6 [shape = 's32[2]{0}', space=sflag, size = 0x8, scoped, tag = 'scoped memory for tpu_custom_call.1']
    #allocation7 [shape = 'u8[8192]{0}', space=vmem, size = 0x2000, scoped, tag = 'output window, operand 0']
    %7 = vsyncpa [#allocation3], 0
    %s8 = scalar_lea.sflag [#allocation3], 1
    %9 = vsyncpa %s8, 0
    %10 = vsyncpa [#allocation6], 0
    %s11 = scalar_lea.sflag [#allocation6], 1
    %12 = vsyncpa %s11, 0
    %13 = vsyncpa [#allocation4], 0
    %s14 = scalar_lea.sflag [#allocation4], 1
    %15 = vsyncpa %s14, 0
    loop: start=0, step=1, limit=4
    $region2: #{tpu_custom_call.1} parent=1 // loop_pre_header
      _
    $region3: #{tpu_custom_call.1} parent=1 // loop_header
      %s17 = sphi 0, %s21
      %p18 = scmp.ge.s32.totalorder %s17, 4
      %s27 = sphi 0, %s29
      %s30 = sphi 0, %s27
      %s31 = sphi 0, %s30
      %s47 = sphi 0, %s31
      %s53 = sphi 0, %s55
      %s56 = sphi 0, %s53
      %s57 = sphi 0, %s56
      %s73 = sphi 0, %s57
      %s79 = sphi 0, %s81
      %s82 = sphi 0, %s79
      %s83 = sphi 0, %s82
      %s99 = sphi 0, %s83
    $region4: #{tpu_custom_call.1} parent=1 // loop_header_branch
      %20 = sbr.rel (%p18) target = $region8
    $region5: #{tpu_custom_call.1} parent=1 // loop_body
      %s22 = ssub.s32 %s17, 1
      %s23 = ssub.s32 %s17, 2
      %s24 = sadd.s32 %s17, 1
      %s25 = ssub.s32 %s17, %s24
      %p26 = scmp.eq.s32.totalorder %s25, 0
      %s28 = sadd.s32 %s27, 1
      %s29 = scalar_select %p26, %s27, %s28
      %p32 = pneg %p26
      %p33 = scmp.eq.s32.totalorder %s17, 1
      %p34 = por %p32, %p33
      %p35 = scmp.ne.s32.totalorder %s27, %s30
      %p36 = scmp.eq.s32.totalorder %s17, 0
      %p37 = por %p35, %p36
      %p38 = scmp.ne.s32.totalorder %s27, %s30
      %p39 = scmp.eq.s32.totalorder %s22, 1
      %p40 = por %p38, %p39
      %p41 = scmp.ne.s32.totalorder %s30, %s31
      %p42 = scmp.eq.s32.totalorder %s22, 0
      %p43 = por %p41, %p42
      %p44 = scmp.ne.s32.totalorder %s30, %s31
      %p45 = scmp.eq.s32.totalorder %s23, 1
      %p46 = por %p44, %p45
      %p48 = scmp.ne.s32.totalorder %s31, %s47
      %p49 = scmp.eq.s32.totalorder %s23, 0
      %p50 = por %p48, %p49
      %s51 = ssub.s32 %s17, %s24
      %p52 = scmp.eq.s32.totalorder %s51, 0
      %s54 = sadd.s32 %s53, 1
      %s55 = scalar_select %p52, %s53, %s54
      %p58 = pneg %p52
      %p59 = scmp.eq.s32.totalorder %s17, 1
      %p60 = por %p58, %p59
      %p61 = scmp.ne.s32.totalorder %s53, %s56
      %p62 = scmp.eq.s32.totalorder %s17, 0
      %p63 = por %p61, %p62
      %p64 = scmp.ne.s32.totalorder %s53, %s56
      %p65 = scmp.eq.s32.totalorder %s22, 1
      %p66 = por %p64, %p65
      %p67 = scmp.ne.s32.totalorder %s56, %s57
      %p68 = scmp.eq.s32.totalorder %s22, 0
      %p69 = por %p67, %p68
      %p70 = scmp.ne.s32.totalorder %s56, %s57
      %p71 = scmp.eq.s32.totalorder %s23, 1
      %p72 = por %p70, %p71
      %p74 = scmp.ne.s32.totalorder %s57, %s73
      %p75 = scmp.eq.s32.totalorder %s23, 0
      %p76 = por %p74, %p75
      %s77 = ssub.s32 %s17, %s24
      %p78 = scmp.eq.s32.totalorder %s77, 0
      %s80 = sadd.s32 %s79, 1
      %s81 = scalar_select %p78, %s79, %s80
      %p84 = pneg %p78
      %p85 = scmp.eq.s32.totalorder %s17, 1
      %p86 = por %p84, %p85
      %p87 = scmp.ne.s32.totalorder %s79, %s82
      %p88 = scmp.eq.s32.totalorder %s17, 0
      %p89 = por %p87, %p88
      %p90 = scmp.ne.s32.totalorder %s79, %s82
      %p91 = scmp.eq.s32.totalorder %s22, 1
      %p92 = por %p90, %p91
      %p93 = scmp.ne.s32.totalorder %s82, %s83
      %p94 = scmp.eq.s32.totalorder %s22, 0
      %p95 = por %p93, %p94
      %p96 = scmp.ne.s32.totalorder %s82, %s83
      %p97 = scmp.eq.s32.totalorder %s23, 1
      %p98 = por %p96, %p97
      %p100 = scmp.ne.s32.totalorder %s83, %s99
      %p101 = scmp.eq.s32.totalorder %s23, 0
      %p102 = por %p100, %p101
      %p103 = scmp.le.s32.totalorder 1, %s17
      %p104 = scmp.lt.s32.totalorder %s17, 3
      %p105 = pnand %p103, %p104
      %p106 = pneg %p105
      // Predicated region
      $region9: #{tpu_custom_call.1} parent=5 // pred_check
        _
      $region10: #{tpu_custom_call.1} parent=5 // pred_check_branch
        %108 = sbr.rel (%p105) target = $region12
      $region11: #{tpu_custom_call.1} parent=5 // pred_region
        %s109 = ssub.s32 %s17, 1
      $region12: #{tpu_custom_call.1} parent=5 // pred_fallthru
        _
      %p110 = scmp.lt.s32.totalorder %s17, 2
      // Predicated region
      $region13: #{tpu_custom_call.1} parent=5 // pred_check
        %p111 = pneg %p110
      $region14: #{tpu_custom_call.1} parent=5 // pred_check_branch
        %113 = sbr.rel (%p111) target = $region16
      $region15: #{tpu_custom_call.1} parent=5 // pred_region
        // Predicated region
        $region17: #{tpu_custom_call.1} parent=15 // pred_check
          %p114 = pneg %p37
        $region18: #{tpu_custom_call.1} parent=15 // pred_check_branch
          %116 = sbr.rel (%p114) target = $region20
        $region19: #{tpu_custom_call.1} parent=15 // pred_region
          %s117 = sand.u32 %s27, 1
          %s118 = scalar_lea.sflag [#allocation3], %s117
          %s119 = sand.u32 %s27, 1
          %s120 = smul.addr %s119, 8
          %s121 = scalar_lea.vmem [#allocation2], %s120
          %123 = vsyncadd %s118, 0
          %s124 = smul.addr %s17, 8
          %s125 = scalar_lea.hbm %s0, %s124
          %s127 = sshll.u32 %s125, 4
          %s128 = int_to_ptr.hbm [resolvable:$true] %s127
          %s129 = sshll.u32 %s121, 4
          %s130 = int_to_ptr.vmem [resolvable:$true] %s129
          %132 = dma.hbm_to_vmem [thread:$0]  %s128, 128, %s130, %s118
        $region20: #{tpu_custom_call.1} parent=15 // pred_fallthru
          _
        // Predicated region
        $region21: #{tpu_custom_call.1} parent=15 // pred_check
          %p133 = pneg %p63
        $region22: #{tpu_custom_call.1} parent=15 // pred_check_branch
          %135 = sbr.rel (%p133) target = $region24
        $region23: #{tpu_custom_call.1} parent=15 // pred_region
          %s136 = sand.u32 %s53, 1
          %s137 = scalar_lea.sflag [#allocation6], %s136
          %s138 = sand.u32 %s53, 1
          %s139 = smul.addr %s138, 8
          %s140 = scalar_lea.vmem [#allocation5], %s139
          %142 = vsyncadd %s137, 0
          %s143 = smul.addr %s17, 8
          %s144 = scalar_lea.hbm %s1, %s143
          %s146 = sshll.u32 %s144, 4
          %s147 = int_to_ptr.hbm [resolvable:$true] %s146
          %s148 = sshll.u32 %s140, 4
          %s149 = int_to_ptr.vmem [resolvable:$true] %s148
          %151 = dma.hbm_to_vmem [thread:$0]  %s147, 128, %s149, %s137
        $region24: #{tpu_custom_call.1} parent=15 // pred_fallthru
          _
      $region16: #{tpu_custom_call.1} parent=5 // pred_fallthru
        _
      %p152 = scmp.le.s32.totalorder 1, %s17
      %p153 = scmp.lt.s32.totalorder %s17, 3
      %p154 = pnand %p152, %p153
      %p155 = pneg %p154
      // Predicated region
      $region25: #{tpu_custom_call.1} parent=5 // pred_check
        _
      $region26: #{tpu_custom_call.1} parent=5 // pred_check_branch
        %157 = sbr.rel (%p154) target = $region28
      $region27: #{tpu_custom_call.1} parent=5 // pred_region
        %s158 = ssub.s32 %s17, 1
        %s159 = sand.u32 %s30, 1
        %s160 = scalar_lea.sflag [#allocation3], %s159
        %s161 = sand.u32 %s30, 1
        %s162 = smul.addr %s161, 8
        %s163 = scalar_lea.vmem [#allocation2], %s162
        // Predicated region
        $region29: #{tpu_custom_call.1} parent=27 // pred_check
          %p164 = pneg %p43
        $region30: #{tpu_custom_call.1} parent=27 // pred_check_branch
          %166 = sbr.rel (%p164) target = $region32
        $region31: #{tpu_custom_call.1} parent=27 // pred_region
          %168 = dma.done %s160, 128
        $region32: #{tpu_custom_call.1} parent=27 // pred_fallthru
          _
        %s169 = sand.u32 %s56, 1
        %s170 = scalar_lea.sflag [#allocation6], %s169
        %s171 = sand.u32 %s56, 1
        %s172 = smul.addr %s171, 8
        %s173 = scalar_lea.vmem [#allocation5], %s172
        // Predicated region
        $region33: #{tpu_custom_call.1} parent=27 // pred_check
          %p174 = pneg %p69
        $region34: #{tpu_custom_call.1} parent=27 // pred_check_branch
          %176 = sbr.rel (%p174) target = $region36
        $region35: #{tpu_custom_call.1} parent=27 // pred_region
          %178 = dma.done %s170, 128
        $region36: #{tpu_custom_call.1} parent=27 // pred_fallthru
          _
        %s179 = sand.u32 %s30, 1
        %s180 = scalar_lea.sflag [#allocation3], %s179
        %s181 = sand.u32 %s30, 1
        %s182 = smul.addr %s181, 8
        %s183 = scalar_lea.vmem [#allocation2], %s182
        %p184 = pneg %p43
        %p185 = pneg %p40
        %s186 = sand.u32 %s56, 1
        %s187 = scalar_lea.sflag [#allocation6], %s186
        %s188 = sand.u32 %s56, 1
        %s189 = smul.addr %s188, 8
        %s190 = scalar_lea.vmem [#allocation5], %s189
        %p191 = pneg %p69
        %p192 = pneg %p66
        %p193 = pneg %p95
        %p194 = pneg %p92
        %s195 = sand.u32 %s82, 1
        %s196 = scalar_lea.sflag [#allocation4], %s195
        %s197 = sand.u32 %s82, 1
        %s198 = smul.addr %s197, 8
        %s199 = scalar_lea.vmem [#allocation7], %s198
        %v200 = vld [vmem:[%s163] sm:$0xff]
        %v201 = vld [vmem:[%s173] sm:$0xff]
        %v202 = vlog2.pop %v200
        %v203 = vmul.f32 %v202, 0.6931472
        %v204 = vmax.f32 %v203, -100.0
        %v205 = vsub.f32 0.0, %v200
        %v206 = vadd.f32 %v205, 1.0
        %v207 = vlog2.pop %v206
        %v208 = vmul.f32 %v207, 0.6931472
        %v209 = vmul.f32 -0.5, %v205
        %v210 = vadd.f32 %v209, 1.0
        %v211 = vmul.f32 %v210, %v205
        %v212 = vand.u32 2147483647, %v205
        %vm213 = vcmp.lt.f32.partialorder %v212, 0.0004427343
        %v214 = vsel %vm213, %v211, %v208
        %v215 = vmax.f32 %v214, -100.0
        %v216 = vsub.f32 1.0, %v201
        %v217 = vmul.f32 %v201, %v204
        %v218 = vmul.f32 %v216, %v215
        %v219 = vadd.f32 %v217, %v218
        %v220 = vsub.f32 0.0, %v219
        %v221 = vmul.f32 %v200, %v201
        %v222 = vsub.f32 1.0, %v200
        %v223 = vmul.f32 %v222, %v216
        %v224 = vadd.f32 %v221, %v223
        %v225 = vsub.f32 1.0, %v224
        %v226 = vmul.f32 %v225, %v225
        %v227 = vmul.f32 %v220, %v226
        %228 = vst [vmem:[%s199] sm:$0xff] %v227
        %s229 = sand.u32 %s82, 1
        %s230 = scalar_lea.sflag [#allocation4], %s229
        %s231 = sand.u32 %s82, 1
        %s232 = smul.addr %s231, 8
        %s233 = scalar_lea.vmem [#allocation7], %s232
        // Predicated region
        $region37: #{tpu_custom_call.1} parent=27 // pred_check
          %p234 = pneg %p92
        $region38: #{tpu_custom_call.1} parent=27 // pred_check_branch
          %236 = sbr.rel (%p234) target = $region40
        $region39: #{tpu_custom_call.1} parent=27 // pred_region
          %238 = vsyncadd %s230, 0
          %s239 = smul.addr %s22, 8
          %s240 = scalar_lea.hbm %s2, %s239
          %s242 = sshll.u32 %s233, 4
          %s243 = int_to_ptr.vmem [resolvable:$true] %s242
          %s244 = sshll.u32 %s240, 4
          %s245 = int_to_ptr.hbm [resolvable:$true] %s244
          %247 = dma.vmem_to_hbm [thread:$0]  %s243, 128, %s245, %s230
        $region40: #{tpu_custom_call.1} parent=27 // pred_fallthru
          _
      $region28: #{tpu_custom_call.1} parent=5 // pred_fallthru
        _
      %p248 = scmp.le.s32.totalorder 2, %s17
      // Predicated region
      $region41: #{tpu_custom_call.1} parent=5 // pred_check
        %p249 = pneg %p248
      $region42: #{tpu_custom_call.1} parent=5 // pred_check_branch
        %251 = sbr.rel (%p249) target = $region44
      $region43: #{tpu_custom_call.1} parent=5 // pred_region
        %s252 = ssub.s32 %s17, 2
        // Predicated region
        $region45: #{tpu_custom_call.1} parent=43 // pred_check
          %p253 = pneg %p98
        $region46: #{tpu_custom_call.1} parent=43 // pred_check_branch
          %255 = sbr.rel (%p253) target = $region48
        $region47: #{tpu_custom_call.1} parent=43 // pred_region
          %s256 = sand.u32 %s83, 1
          %s257 = scalar_lea.sflag [#allocation4], %s256
          %s258 = sand.u32 %s83, 1
          %s259 = smul.addr %s258, 8
          %s260 = scalar_lea.vmem [#allocation7], %s259
          %262 = dma.done %s257, 128
        $region48: #{tpu_custom_call.1} parent=43 // pred_fallthru
          _
      $region44: #{tpu_custom_call.1} parent=5 // pred_fallthru
        _
    $region6: #{tpu_custom_call.1} parent=1 // loop_footer
      %s21 = sadd.s32 1, %s17
    $region7: #{tpu_custom_call.1} parent=1 // loop_footer_branch
      %16 = sbr.rel target = $region3
    $region8: #{tpu_custom_call.1} parent=1 // loop_exit
      _
    %263 = vsyncpa [#allocation3], 1
    %s264 = scalar_lea.sflag [#allocation3], 1
    %265 = vsyncpa %s264, 1
    %266 = vsyncpa [#allocation6], 1
    %s267 = scalar_lea.sflag [#allocation6], 1
    %268 = vsyncpa %s267, 1
    %269 = vsyncpa [#allocation4], 1
    %s270 = scalar_lea.sflag [#allocation4], 1
    %271 = vsyncpa %s270, 1

</llo_original>
